<compile_context>
chip_gen: v7x
topology: tpu7x:2x2x1
jax: 0.10.0
libtpu: 0.0.40
codegen_flags: <defaults>
</compile_context>

<pallas_src>
import jax
import jax.numpy as jnp
from jax import lax
from jax.experimental import pallas as pl
from jax.experimental.pallas import tpu as pltpu


def _both_matmuls(label, x_tile):
    """relu-free core: (label @ x_tile^T) @ x_tile accumulated in f32."""
    # m1 = label @ x_tile^T, contracting the shared last (D) axis of both
    # operands -> no transpose/relayout of the x tile on the critical path.
    m1 = lax.dot_general(
        label, x_tile,
        dimension_numbers=(((1,), (1,)), ((), ())),
        preferred_element_type=jnp.float32)              # (L_pad, tk) f32
    # Feed the second MXU pass in the input dtype (bf16 stays bf16).
    if x_tile.dtype != jnp.float32:
        m1 = m1.astype(x_tile.dtype)
    return lax.dot_general(
        m1, x_tile,
        dimension_numbers=(((1,), (0,)), ((), ())),
        preferred_element_type=jnp.float32)              # (L_pad, D_pad) f32


def _single_step_kernel(label_ref, x_ref, out_ref):
    # label_ref: (L_pad, D_pad), x_ref: (T_pad, D_pad), out_ref: (L_pad, D_pad)
    att = _both_matmuls(label_ref[...], x_ref[...])
    out_ref[...] = jnp.maximum(att, 0.0).astype(out_ref.dtype)


def _multi_step_kernel(label_ref, x_ref, out_ref, acc_ref):
    # label_ref: (L_pad, D_pad)   shared across batch and T tiles
    # x_ref:     (tk, D_pad)      current T tile of current batch element
    # out_ref:   (L_pad, D_pad)   resident across the T-reduction axis
    # acc_ref:   (L_pad, D_pad)   f32 VMEM accumulator
    k = pl.program_id(1)

    @pl.when(k == 0)
    def _zero():
        acc_ref[...] = jnp.zeros_like(acc_ref)

    acc_ref[...] += _both_matmuls(label_ref[...], x_ref[...])

    @pl.when(k == pl.num_programs(1) - 1)
    def _finalize():
        out_ref[...] = jnp.maximum(acc_ref[...], 0.0).astype(out_ref.dtype)


def _round_up(v: int, m: int) -> int:
    return ((v + m - 1) // m) * m


def nc_label_self_attention(x, label, *, tk=None):
    """x: (B, T, D), label: (L, D) -> relu((label @ x^T) @ x): (B, L, D)."""
    B, T, D = x.shape
    L, D2 = label.shape
    assert D == D2, "hidden dims of x and label must match"

    # Lane/sublane-friendly padding (zero padding is inert for both matmuls).
    D_pad = _round_up(D, 128)
    L_pad = _round_up(L, 8)
    T_min = _round_up(T, 8)

    itemsize = jnp.dtype(x.dtype).itemsize
    if tk is None:
        # ~4 MiB per x tile in the input dtype (8 MiB double-buffered).
        rows_per_4mib = max(8, (4 * 1024 * 1024) // (D_pad * itemsize))
        tk = min(T_min, (rows_per_4mib // 8) * 8)
    tk = max(8, _round_up(tk, 8))
    tk = min(tk, T_min)
    T_pad = _round_up(T, tk)
    num_k = T_pad // tk

    if (T_pad, D_pad) != (T, D):
        x = jnp.pad(x, ((0, 0), (0, T_pad - T), (0, D_pad - D)))
    if (L_pad, D_pad) != (L, D):
        label = jnp.pad(label, ((0, L_pad - L), (0, D_pad - D)))

    out_shape = jax.ShapeDtypeStruct((B, L_pad, D_pad), x.dtype)
    compiler_params = pltpu.CompilerParams(
        dimension_semantics=("parallel",) if num_k == 1
        else ("parallel", "arbitrary"),
        vmem_limit_bytes=48 * 1024 * 1024,
    )

    if num_k == 1:
        # Whole padded sequence fits in one tile: no accumulator, no epilogue.
        grid_spec = pltpu.PrefetchScalarGridSpec(
            num_scalar_prefetch=0,
            grid=(B,),
            in_specs=[
                pl.BlockSpec((L_pad, D_pad), lambda b: (0, 0)),
                pl.BlockSpec((None, T_pad, D_pad), lambda b: (b, 0, 0)),
            ],
            out_specs=pl.BlockSpec((None, L_pad, D_pad), lambda b: (b, 0, 0)),
        )
        kernel = _single_step_kernel
    else:
        grid_spec = pltpu.PrefetchScalarGridSpec(
            num_scalar_prefetch=0,
            grid=(B, num_k),
            in_specs=[
                # label: constant block index -> never re-DMA'd across steps.
                pl.BlockSpec((L_pad, D_pad), lambda b, k: (0, 0)),
                # x: one (tk, D_pad) tile of one batch element; batch squeezed.
                pl.BlockSpec((None, tk, D_pad), lambda b, k: (b, k, 0)),
            ],
            # output block index constant across k -> stays resident while the
            # accumulator runs over the T tiles.
            out_specs=pl.BlockSpec((None, L_pad, D_pad), lambda b, k: (b, 0, 0)),
            scratch_shapes=[pltpu.VMEM((L_pad, D_pad), jnp.float32)],
        )
        kernel = _multi_step_kernel

    out = pl.pallas_call(
        kernel,
        out_shape=out_shape,
        grid_spec=grid_spec,
        compiler_params=compiler_params,
    )(label, x)

    if (L_pad, D_pad) != (L, D):
        out = out[:, :L, :D]
    return out


def _reference(x, label):
    # plain-JAX reference of the PyTorch forward
    B = x.shape[0]
    lab = jnp.broadcast_to(label, (B,) + label.shape)      # (B, L, D)
    m1 = jnp.einsum("bld,btd->blt", lab, x)                 # (B, L, T)
    att = jnp.einsum("blt,btd->bld", m1, x)                 # (B, L, D)
    return jnp.maximum(att, 0.0)


if __name__ == "__main__":
    key = jax.random.PRNGKey(0)
    kx, kl, kx2 = jax.random.split(key, 3)

    # Small shapes consistent with the module: batch=2, seq=8, hidden=32,
    # labels=16.  Exercises the single-step (no-accumulator) path.
    B, T, D, L = 2, 8, 32, 16
    x = jax.random.normal(kx, (B, T, D), dtype=jnp.float32)
    label = jax.random.normal(kl, (L, D), dtype=jnp.float32)

    out = jax.block_until_ready(nc_label_self_attention(x, label))
    ref = _reference(x, label)
    assert out.shape == (B, L, D)
    assert jnp.allclose(out, ref, atol=1e-4, rtol=1e-4), "mismatch (single-step)"

    # Longer (non-tile-aligned) sequence to exercise the T-reduction /
    # accumulator path with multiple grid steps.
    T2 = 200
    x2 = jax.random.normal(kx2, (B, T2, D), dtype=jnp.float32)
    out2 = jax.block_until_ready(nc_label_self_attention(x2, label, tk=64))
    ref2 = _reference(x2, label)
    assert out2.shape == (B, L, D)
    assert jnp.allclose(out2, ref2, atol=1e-3, rtol=1e-4), "mismatch (multi-step)"

    print("KERNEL_OK")
</pallas_src>

<mosaic_0001>
module attributes {stable_mosaic.version = 11 : i64} {
  func.func @_single_step_kernel(%arg0: i32, %arg1: memref<16x128xf32, #tpu.memory_space<vmem>>, %arg2: memref<1x8x128xf32, #tpu.memory_space<vmem>>, %arg3: memref<1x16x128xf32, #tpu.memory_space<vmem>>) attributes {dimension_semantics = [#tpu.dimension_semantics<parallel>], iteration_bounds = array<i64: 2>, scalar_prefetch = 0 : i64, scratch_operands = 0 : i64, tpu.core_type = #tpu.core_type<tc>, window_params = [{pipeline_mode = #tpu.pipeline_mode<synchronous>, transform_indices = @transform_0, window_bounds = array<i64: 16, 128>}, {transform_indices = @transform_1, window_bounds = array<i64: 1, 8, 128>}, {transform_indices = @transform_2, window_bounds = array<i64: 1, 16, 128>}]} {
    %c0 = arith.constant 0 : index
    %c0_0 = arith.constant 0 : index
    %0 = vector.load %arg1[%c0, %c0_0] : memref<16x128xf32, #tpu.memory_space<vmem>>, vector<16x128xf32>
    %c0_1 = arith.constant 0 : index
    %c0_2 = arith.constant 0 : index
    %c0_3 = arith.constant 0 : index
    %1 = vector.load %arg2[%c0_1, %c0_2, %c0_3] : memref<1x8x128xf32, #tpu.memory_space<vmem>>, vector<1x8x128xf32>
    %2 = vector.shape_cast %1 : vector<1x8x128xf32> to vector<8x128xf32>
    %cst = arith.constant dense<0.000000e+00> : vector<16x8xf32>
    %3 = tpu.matmul %0, %2, %cst {dimension_numbers = #tpu.dot_dimension_numbers<[1], [1], [0], [0], [0, 0, 1, 0], [], []>} : vector<16x128xf32>, vector<8x128xf32>, vector<16x8xf32> -> vector<16x8xf32>
    %cst_4 = arith.constant dense<0.000000e+00> : vector<16x128xf32>
    %4 = tpu.matmul %3, %2, %cst_4 {dimension_numbers = #tpu.dot_dimension_numbers<[1], [0], [0], [1], [0, 0, 1, 1], [], []>} : vector<16x8xf32>, vector<8x128xf32>, vector<16x128xf32> -> vector<16x128xf32>
    %cst_5 = arith.constant 0.000000e+00 : f32
    %5 = vector.broadcast %cst_5 : f32 to vector<16x128xf32>
    %6 = arith.maximumf %4, %5 : vector<16x128xf32>
    %c0_6 = arith.constant 0 : index
    %c0_7 = arith.constant 0 : index
    %c0_8 = arith.constant 0 : index
    %7 = vector.load %arg3[%c0_6, %c0_7, %c0_8] : memref<1x16x128xf32, #tpu.memory_space<vmem>>, vector<1x16x128xf32>
    %8 = vector.shape_cast %7 : vector<1x16x128xf32> to vector<16x128xf32>
    %9 = vector.shape_cast %6 : vector<16x128xf32> to vector<1x16x128xf32>
    tpu.vector_store %arg3[%c0_6, %c0_7, %c0_8], %9 {strides = array<i32>} : memref<1x16x128xf32, #tpu.memory_space<vmem>>, vector<1x16x128xf32>,
    return
  }
  func.func @transform_0(%arg0: i32) -> (i32, i32) {
    %c0_i32 = arith.constant 0 : i32
    %c0_i32_0 = arith.constant 0 : i32
    %c0_i32_1 = arith.constant 0 : i32
    return %c0_i32, %c0_i32_0 : i32, i32
  }
  func.func @transform_1(%arg0: i32) -> (i32, i32, i32) {
    %c0_i32 = arith.constant 0 : i32
    %c0_i32_0 = arith.constant 0 : i32
    %c0_i32_1 = arith.constant 0 : i32
    return %arg0, %c0_i32, %c0_i32_0 : i32, i32, i32
  }
  func.func @transform_2(%arg0: i32) -> (i32, i32, i32) {
    %c0_i32 = arith.constant 0 : i32
    %c0_i32_0 = arith.constant 0 : i32
    %c0_i32_1 = arith.constant 0 : i32
    return %arg0, %c0_i32, %c0_i32_0 : i32, i32, i32
  }
}

</mosaic_0001>

<llo_original>
// kernel: tpu_custom_call.1
$region0: #{tpu_custom_call.1}
  #allocation0 [shape = 'u32[]', space=smem, size = 0x4, offset = 0x4, fixed_abs, tag = 'smem constant byte address 0x4 - core index']
  #allocation1 [shape = 'u32[144,128]{1,0:T(1,128)}', space=vmem, size = 0x12000, scoped, tag = 'internal scratch']
  %s0 = inlined_call_operand.hbm [shape: f32[16,128], index: 0, kind: input, shape index: {}]
  %s1 = inlined_call_operand.hbm [shape: f32[2,8,128], index: 1, kind: input, shape index: {}]
  %s2 = inlined_call_operand.hbm [shape: f32[2,16,128], index: 2, kind: output, shape index: {}]
  %s3 = sld [smem:[#allocation0]]
  $region49: #{tpu_custom_call.1} parent=0
    _
  %s5 = ssub.s32 1, %s3
  %s6 = scalar_select 0, %s5, %s3
  $region1: #{tpu_custom_call.1} parent=0
    #allocation2 [shape = 'u8[8192]{0}', space=vmem, size = 0x2000, scoped, tag = 'input window, operand 0, single buffered']
    #allocation3 [shape = 's32[2]{0}', space=sflag, size = 0x8, scoped, tag = 'scoped memory for tpu_custom_call.1']
    #allocation4 [shape = 's32[2]{0}', space=sflag, size = 0x8, scoped, tag = 'scoped memory for tpu_custom_call.1']
    #allocation5 [shape = 'u8[8192]{0}', space=vmem, size = 0x2000, scoped, tag = 'input window, operand 1']
    #allocation6 [shape = 's32[2]{0}', space=sflag, size = 0x8, scoped, tag = 'scoped memory for tpu_custom_call.1']
    #allocation7 [shape = 'u8[16384]{0}', space=vmem, size = 0x4000, scoped, tag = 'output window, operand 0']
    %7 = vsyncpa [#allocation3], 0
    %8 = vsyncpa [#allocation6], 0
    %s9 = scalar_lea.sflag [#allocation6], 1
    %10 = vsyncpa %s9, 0
    %11 = vsyncpa [#allocation4], 0
    %s12 = scalar_lea.sflag [#allocation4], 1
    %13 = vsyncpa %s12, 0
    loop: start=0, step=1, limit=4
    $region2: #{tpu_custom_call.1} parent=1 // loop_pre_header
      _
    $region3: #{tpu_custom_call.1} parent=1 // loop_header
      %s15 = sphi 0, %s19
      %p16 = scmp.ge.s32.totalorder %s15, 4
      %s23 = sphi 0, %s23
      %s25 = sphi 0, %s23
      %s26 = sphi 0, %s25
      %s40 = sphi 0, %s26
      %s46 = sphi 0, %s48
      %s49 = sphi 0, %s46
      %s50 = sphi 0, %s49
      %s66 = sphi 0, %s50
      %s72 = sphi 0, %s74
      %s75 = sphi 0, %s72
      %s76 = sphi 0, %s75
      %s92 = sphi 0, %s76
    $region4: #{tpu_custom_call.1} parent=1 // loop_header_branch
      %18 = sbr.rel (%p16) target = $region8
    $region5: #{tpu_custom_call.1} parent=1 // loop_body
      %s20 = ssub.s32 %s15, 1
      %s21 = ssub.s32 %s15, 2
      %s22 = sadd.s32 %s15, 1
      %s24 = sadd.s32 %s23, 1
      %p27 = scmp.eq.s32.totalorder %s15, 1
      %p28 = scmp.ne.s32.totalorder %s23, %s25
      %p29 = scmp.eq.s32.totalorder %s15, 0
      %p30 = por %p28, %p29
      %p31 = scmp.ne.s32.totalorder %s23, %s25
      %p32 = scmp.eq.s32.totalorder %s20, 1
      %p33 = por %p31, %p32
      %p34 = scmp.ne.s32.totalorder %s25, %s26
      %p35 = scmp.eq.s32.totalorder %s20, 0
      %p36 = por %p34, %p35
      %p37 = scmp.ne.s32.totalorder %s25, %s26
      %p38 = scmp.eq.s32.totalorder %s21, 1
      %p39 = por %p37, %p38
      %p41 = scmp.ne.s32.totalorder %s26, %s40
      %p42 = scmp.eq.s32.totalorder %s21, 0
      %p43 = por %p41, %p42
      %s44 = ssub.s32 %s15, %s22
      %p45 = scmp.eq.s32.totalorder %s44, 0
      %s47 = sadd.s32 %s46, 1
      %s48 = scalar_select %p45, %s46, %s47
      %p51 = pneg %p45
      %p52 = scmp.eq.s32.totalorder %s15, 1
      %p53 = por %p51, %p52
      %p54 = scmp.ne.s32.totalorder %s46, %s49
      %p55 = scmp.eq.s32.totalorder %s15, 0
      %p56 = por %p54, %p55
      %p57 = scmp.ne.s32.totalorder %s46, %s49
      %p58 = scmp.eq.s32.totalorder %s20, 1
      %p59 = por %p57, %p58
      %p60 = scmp.ne.s32.totalorder %s49, %s50
      %p61 = scmp.eq.s32.totalorder %s20, 0
      %p62 = por %p60, %p61
      %p63 = scmp.ne.s32.totalorder %s49, %s50
      %p64 = scmp.eq.s32.totalorder %s21, 1
      %p65 = por %p63, %p64
      %p67 = scmp.ne.s32.totalorder %s50, %s66
      %p68 = scmp.eq.s32.totalorder %s21, 0
      %p69 = por %p67, %p68
      %s70 = ssub.s32 %s15, %s22
      %p71 = scmp.eq.s32.totalorder %s70, 0
      %s73 = sadd.s32 %s72, 1
      %s74 = scalar_select %p71, %s72, %s73
      %p77 = pneg %p71
      %p78 = scmp.eq.s32.totalorder %s15, 1
      %p79 = por %p77, %p78
      %p80 = scmp.ne.s32.totalorder %s72, %s75
      %p81 = scmp.eq.s32.totalorder %s15, 0
      %p82 = por %p80, %p81
      %p83 = scmp.ne.s32.totalorder %s72, %s75
      %p84 = scmp.eq.s32.totalorder %s20, 1
      %p85 = por %p83, %p84
      %p86 = scmp.ne.s32.totalorder %s75, %s76
      %p87 = scmp.eq.s32.totalorder %s20, 0
      %p88 = por %p86, %p87
      %p89 = scmp.ne.s32.totalorder %s75, %s76
      %p90 = scmp.eq.s32.totalorder %s21, 1
      %p91 = por %p89, %p90
      %p93 = scmp.ne.s32.totalorder %s76, %s92
      %p94 = scmp.eq.s32.totalorder %s21, 0
      %p95 = por %p93, %p94
      %p96 = scmp.le.s32.totalorder 1, %s15
      %p97 = scmp.lt.s32.totalorder %s15, 3
      %p98 = pnand %p96, %p97
      %p99 = pneg %p98
      // Predicated region
      $region9: #{tpu_custom_call.1} parent=5 // pred_check
        _
      $region10: #{tpu_custom_call.1} parent=5 // pred_check_branch
        %101 = sbr.rel (%p98) target = $region12
      $region11: #{tpu_custom_call.1} parent=5 // pred_region
        %s102 = ssub.s32 %s15, 1
        // Predicated region
        $region13: #{tpu_custom_call.1} parent=11 // pred_check
          %p103 = pneg %p36
        $region14: #{tpu_custom_call.1} parent=11 // pred_check_branch
          %105 = sbr.rel (%p103) target = $region16
        $region15: #{tpu_custom_call.1} parent=11 // pred_region
          %s107 = ssub.s32 256, 256
          %108 = vsyncadd [#allocation3], %s107
          %s109 = sshll.u32 [#allocation2], 4
          %s110 = int_to_ptr.vmem [resolvable:$true] %s109
          %115 = dma.hbm_to_vmem [thread:$0]  %s0, 256, %s110, [#allocation3], 128, 128, 8
        $region16: #{tpu_custom_call.1} parent=11 // pred_fallthru
          _
      $region12: #{tpu_custom_call.1} parent=5 // pred_fallthru
        _
      %p116 = scmp.lt.s32.totalorder %s15, 2
      // Predicated region
      $region17: #{tpu_custom_call.1} parent=5 // pred_check
        %p117 = pneg %p116
      $region18: #{tpu_custom_call.1} parent=5 // pred_check_branch
        %119 = sbr.rel (%p117) target = $region20
      $region19: #{tpu_custom_call.1} parent=5 // pred_region
        // Predicated region
        $region21: #{tpu_custom_call.1} parent=19 // pred_check
          %p120 = pneg %p56
        $region22: #{tpu_custom_call.1} parent=19 // pred_check_branch
          %122 = sbr.rel (%p120) target = $region24
        $region23: #{tpu_custom_call.1} parent=19 // pred_region
          %s123 = sand.u32 %s46, 1
          %s124 = scalar_lea.sflag [#allocation6], %s123
          %s125 = sand.u32 %s46, 1
          %s126 = smul.addr %s125, 8
          %s127 = scalar_lea.vmem [#allocation5], %s126
          %s129 = ssub.s32 128, 128
          %130 = vsyncadd %s124, %s129
          %s131 = smul.addr %s15, 128
          %s132 = scalar_lea.hbm %s1, %s131
          %s134 = sshll.u32 %s127, 4
          %s135 = int_to_ptr.vmem [resolvable:$true] %s134
          %137 = dma.hbm_to_vmem [thread:$0]  %s132, 128, %s135, %s124
        $region24: #{tpu_custom_call.1} parent=19 // pred_fallthru
          _
      $region20: #{tpu_custom_call.1} parent=5 // pred_fallthru
        _
      %p138 = scmp.le.s32.totalorder 1, %s15
      %p139 = scmp.lt.s32.totalorder %s15, 3
      %p140 = pnand %p138, %p139
      %p141 = pneg %p140
      // Predicated region
      $region25: #{tpu_custom_call.1} parent=5 // pred_check
        _
      $region26: #{tpu_custom_call.1} parent=5 // pred_check_branch
        %143 = sbr.rel (%p140) target = $region28
      $region27: #{tpu_custom_call.1} parent=5 // pred_region
        %s144 = ssub.s32 %s15, 1
        // Predicated region
        $region29: #{tpu_custom_call.1} parent=27 // pred_check
          %p145 = pneg %p36
        $region30: #{tpu_custom_call.1} parent=27 // pred_check_branch
          %147 = sbr.rel (%p145) target = $region32
        $region31: #{tpu_custom_call.1} parent=27 // pred_region
          %148 = dma.done [#allocation3], 256
        $region32: #{tpu_custom_call.1} parent=27 // pred_fallthru
          _
        %s149 = sand.u32 %s49, 1
        %s150 = scalar_lea.sflag [#allocation6], %s149
        %s151 = sand.u32 %s49, 1
        %s152 = smul.addr %s151, 8
        %s153 = scalar_lea.vmem [#allocation5], %s152
        // Predicated region
        $region33: #{tpu_custom_call.1} parent=27 // pred_check
          %p154 = pneg %p62
        $region34: #{tpu_custom_call.1} parent=27 // pred_check_branch
          %156 = sbr.rel (%p154) target = $region36
        $region35: #{tpu_custom_call.1} parent=27 // pred_region
          %157 = dma.done %s150, 128
        $region36: #{tpu_custom_call.1} parent=27 // pred_fallthru
          _
        %p158 = pneg %p36
        %p159 = pneg %p33
        %s160 = sand.u32 %s49, 1
        %s161 = scalar_lea.sflag [#allocation6], %s160
        %s162 = sand.u32 %s49, 1
        %s163 = smul.addr %s162, 8
        %s164 = scalar_lea.vmem [#allocation5], %s163
        %p165 = pneg %p62
        %p166 = pneg %p59
        %p167 = pneg %p88
        %p168 = pneg %p85
        %s169 = sand.u32 %s75, 1
        %s170 = scalar_lea.sflag [#allocation4], %s169
        %s171 = sand.u32 %s75, 1
        %s172 = smul.addr %s171, 16
        %s173 = scalar_lea.vmem [#allocation7], %s172
        %v174 = vld [vmem:[#allocation2] sm:$0xff]
        %v175 = vld [vmem:[#allocation2 + $0x8] sm:$0xff]
        %v176 = vld [vmem:[%s153] sm:$0xff]
        %177 = vmatprep.subr.mxu0 0.0
        %178 = vmatpush1.xpose.msra.mxu0 %v176
        %179 = vmatprep.subr.mxu0 0.0
        %180 = vmatpush1.xpose.msra.mxu0 0.0
        %181 = vmatprep.subr.mxu0 0.0
        %182 = vmatpush1.xpose.msra.mxu0 0.0
        %183 = vmatprep.subr.mxu0 0.0
        %184 = vmatpush1.xpose.msra.mxu0 0.0
        %185 = vmatprep.subr.mxu0 0.0
        %186 = vmatpush1.xpose.msra.mxu0 0.0
        %187 = vmatprep.subr.mxu0 0.0
        %188 = vmatpush1.xpose.msra.mxu0 0.0
        %189 = vmatprep.subr.mxu0 0.0
        %190 = vmatpush1.xpose.msra.mxu0 0.0
        %191 = vmatprep.subr.mxu0 0.0
        %192 = vmatpush1.xpose.msra.mxu0 0.0
        %193 = vmatprep.subr.mxu0 0.0
        %194 = vmatpush1.xpose.msra.mxu0 0.0
        %195 = vmatprep.subr.mxu0 0.0
        %196 = vmatpush1.xpose.msra.mxu0 0.0
        %197 = vmatprep.subr.mxu0 0.0
        %198 = vmatpush1.xpose.msra.mxu0 0.0
        %199 = vmatprep.subr.mxu0 0.0
        %200 = vmatpush1.xpose.msra.mxu0 0.0
        %201 = vmatprep.subr.mxu0 0.0
        %202 = vmatpush1.xpose.msra.mxu0 0.0
        %203 = vmatprep.subr.mxu0 0.0
        %204 = vmatpush1.xpose.msra.mxu0 0.0
        %205 = vmatprep.subr.mxu0 0.0
        %206 = vmatpush1.xpose.msra.mxu0 0.0
        %207 = vmatprep.subr.mxu0 0.0
        %208 = vmatpush1.xpose.msra.mxu0 0.0
        %209 = vmatprep.subr.mxu0 0.0
        %210 = vmatpush1.xpose.msra.mxu0 0.0
        %211 = vmatprep.subr.mxu0 0.0
        %212 = vmatpush1.xpose.msra.mxu0 0.0
        %213 = vmatprep.subr.mxu0 0.0
        %214 = vmatpush1.xpose.msra.mxu0 0.0
        %215 = vmatprep.subr.mxu0 0.0
        %216 = vmatpush1.xpose.msra.mxu0 0.0
        %217 = vmatprep.subr.mxu0 0.0
        %218 = vmatpush1.xpose.msra.mxu0 0.0
        %219 = vmatprep.subr.mxu0 0.0
        %220 = vmatpush1.xpose.msra.mxu0 0.0
        %221 = vmatprep.subr.mxu0 0.0
        %222 = vmatpush1.xpose.msra.mxu0 0.0
        %223 = vmatprep.subr.mxu0 0.0
        %224 = vmatpush1.xpose.msra.mxu0 0.0
        %225 = vmatprep.subr.mxu0 0.0
        %226 = vmatpush1.xpose.msra.mxu0 0.0
        %227 = vmatprep.subr.mxu0 0.0
        %228 = vmatpush1.xpose.msra.mxu0 0.0
        %229 = vmatprep.subr.mxu0 0.0
        %230 = vmatpush1.xpose.msra.mxu0 0.0
        %231 = vmatprep.subr.mxu0 0.0
        %232 = vmatpush1.xpose.msra.mxu0 0.0
        %233 = vmatprep.subr.mxu0 0.0
        %234 = vmatpush1.xpose.msra.mxu0 0.0
        %235 = vmatprep.subr.mxu0 0.0
        %236 = vmatpush1.xpose.msra.mxu0 0.0
        %237 = vmatprep.subr.mxu0 0.0
        %238 = vmatpush1.xpose.msra.mxu0 0.0
        %239 = vmatprep.subr.mxu0 0.0
        %240 = vmatpush1.xpose.msra.mxu0 0.0
        %241 = vmatprep.mubr.f32.mxu0 0.0
        %242 = vmatmul.mubr.f32.gmra.mrb[0].mxu0 %v174
        %v243 = vpop.f32.mrb[0].mxu0
        %v244 = vadd.f32 0.0, %v243
        %v245 = vpop.f32.mrb[0].mxu0
        %246 = vmatprep.mubr.f32.mxu0 0.0
        %247 = vmatmul.mubr.f32.gmra.mrb[0].mxu0 %v175
        %v248 = vpop.f32.mrb[0].mxu0
        %v249 = vadd.f32 0.0, %v248
        %v250 = vpop.f32.mrb[0].mxu0
        %251 = vdwg.mxu0
        %vm252 = vcmask 64512
        %v254 = vsel %vm252, %v244, 0
        %v257 = vsel %vm252, %v249, 0
        %259 = vmatprep.subr.mxu0 0.0
        %260 = vmatpush1.msra.mxu0 %v176
        %261 = vmatprep.subr.mxu0 0.0
        %262 = vmatpush1.msra.mxu0 0.0
        %263 = vmatprep.subr.mxu0 0.0
        %264 = vmatpush1.msra.mxu0 0.0
        %265 = vmatprep.subr.mxu0 0.0
        %266 = vmatpush1.msra.mxu0 0.0
        %267 = vmatprep.subr.mxu0 0.0
        %268 = vmatpush1.msra.mxu0 0.0
        %269 = vmatprep.subr.mxu0 0.0
        %270 = vmatpush1.msra.mxu0 0.0
        %271 = vmatprep.subr.mxu0 0.0
        %272 = vmatpush1.msra.mxu0 0.0
        %273 = vmatprep.subr.mxu0 0.0
        %274 = vmatpush1.msra.mxu0 0.0
        %275 = vmatprep.subr.mxu0 0.0
        %276 = vmatpush1.msra.mxu0 0.0
        %277 = vmatprep.subr.mxu0 0.0
        %278 = vmatpush1.msra.mxu0 0.0
        %279 = vmatprep.subr.mxu0 0.0
        %280 = vmatpush1.msra.mxu0 0.0
        %281 = vmatprep.subr.mxu0 0.0
        %282 = vmatpush1.msra.mxu0 0.0
        %283 = vmatprep.subr.mxu0 0.0
        %284 = vmatpush1.msra.mxu0 0.0
        %285 = vmatprep.subr.mxu0 0.0
        %286 = vmatpush1.msra.mxu0 0.0
        %287 = vmatprep.subr.mxu0 0.0
        %288 = vmatpush1.msra.mxu0 0.0
        %289 = vmatprep.subr.mxu0 0.0
        %290 = vmatpush1.msra.mxu0 0.0
        %291 = vmatprep.subr.mxu0 0.0
        %292 = vmatpush1.msra.mxu0 0.0
        %293 = vmatprep.subr.mxu0 0.0
        %294 = vmatpush1.msra.mxu0 0.0
        %295 = vmatprep.subr.mxu0 0.0
        %296 = vmatpush1.msra.mxu0 0.0
        %297 = vmatprep.subr.mxu0 0.0
        %298 = vmatpush1.msra.mxu0 0.0
        %299 = vmatprep.subr.mxu0 0.0
        %300 = vmatpush1.msra.mxu0 0.0
        %301 = vmatprep.subr.mxu0 0.0
        %302 = vmatpush1.msra.mxu0 0.0
        %303 = vmatprep.subr.mxu0 0.0
        %304 = vmatpush1.msra.mxu0 0.0
        %305 = vmatprep.subr.mxu0 0.0
        %306 = vmatpush1.msra.mxu0 0.0
        %307 = vmatprep.subr.mxu0 0.0
        %308 = vmatpush1.msra.mxu0 0.0
        %309 = vmatprep.subr.mxu0 0.0
        %310 = vmatpush1.msra.mxu0 0.0
        %311 = vmatprep.subr.mxu0 0.0
        %312 = vmatpush1.msra.mxu0 0.0
        %313 = vmatprep.subr.mxu0 0.0
        %314 = vmatpush1.msra.mxu0 0.0
        %315 = vmatprep.subr.mxu0 0.0
        %316 = vmatpush1.msra.mxu0 0.0
        %317 = vmatprep.subr.mxu0 0.0
        %318 = vmatpush1.msra.mxu0 0.0
        %319 = vmatprep.subr.mxu0 0.0
        %320 = vmatpush1.msra.mxu0 0.0
        %321 = vmatprep.subr.mxu0 0.0
        %322 = vmatpush1.msra.mxu0 0.0
        %323 = vmatprep.mubr.f32.mxu0 0.0
        %324 = vmatmul.mubr.f32.gmra.mrb[0].mxu0 %v254
        %v325 = vpop.f32.mrb[0].mxu0
        %v326 = vadd.f32 0.0, %v325
        %v327 = vpop.f32.mrb[0].mxu0
        %328 = vmatprep.mubr.f32.mxu0 0.0
        %329 = vmatmul.mubr.f32.gmra.mrb[0].mxu0 %v257
        %v330 = vpop.f32.mrb[0].mxu0
        %v331 = vadd.f32 0.0, %v330
        %v332 = vpop.f32.mrb[0].mxu0
        %333 = vdwg.mxu0
        %v334 = vmax.f32 %v326, 0.0
        %v335 = vmax.f32 %v331, 0.0
        %336 = vst [vmem:[%s173] sm:$0xff] %v334
        %337 = vst [vmem:[%s173 + $0x8] sm:$0xff] %v335
        %s338 = sand.u32 %s75, 1
        %s339 = scalar_lea.sflag [#allocation4], %s338
        %s340 = sand.u32 %s75, 1
        %s341 = smul.addr %s340, 16
        %s342 = scalar_lea.vmem [#allocation7], %s341
        // Predicated region
        $region37: #{tpu_custom_call.1} parent=27 // pred_check
          %p343 = pneg %p85
        $region38: #{tpu_custom_call.1} parent=27 // pred_check_branch
          %345 = sbr.rel (%p343) target = $region40
        $region39: #{tpu_custom_call.1} parent=27 // pred_region
          %s347 = ssub.s32 256, 256
          %348 = vsyncadd %s339, %s347
          %s349 = smul.addr %s20, 2
          %s350 = smul.addr %s349, 128
          %s351 = scalar_lea.hbm %s2, %s350
          %s352 = sshll.u32 %s342, 4
          %s353 = int_to_ptr.vmem [resolvable:$true] %s352
          %358 = dma.vmem_to_hbm [thread:$0]  %s353, 256, %s351, %s339, 128, 128, 8
        $region40: #{tpu_custom_call.1} parent=27 // pred_fallthru
          _
      $region28: #{tpu_custom_call.1} parent=5 // pred_fallthru
        _
      %p359 = scmp.le.s32.totalorder 2, %s15
      // Predicated region
      $region41: #{tpu_custom_call.1} parent=5 // pred_check
        %p360 = pneg %p359
      $region42: #{tpu_custom_call.1} parent=5 // pred_check_branch
        %362 = sbr.rel (%p360) target = $region44
      $region43: #{tpu_custom_call.1} parent=5 // pred_region
        %s363 = ssub.s32 %s15, 2
        // Predicated region
        $region45: #{tpu_custom_call.1} parent=43 // pred_check
          %p364 = pneg %p91
        $region46: #{tpu_custom_call.1} parent=43 // pred_check_branch
          %366 = sbr.rel (%p364) target = $region48
        $region47: #{tpu_custom_call.1} parent=43 // pred_region
          %s367 = sand.u32 %s76, 1
          %s368 = scalar_lea.sflag [#allocation4], %s367
          %s369 = sand.u32 %s76, 1
          %s370 = smul.addr %s369, 16
          %s371 = scalar_lea.vmem [#allocation7], %s370
          %372 = dma.done %s368, 256
        $region48: #{tpu_custom_call.1} parent=43 // pred_fallthru
          _
      $region44: #{tpu_custom_call.1} parent=5 // pred_fallthru
        _
    $region6: #{tpu_custom_call.1} parent=1 // loop_footer
      %s19 = sadd.s32 1, %s15
    $region7: #{tpu_custom_call.1} parent=1 // loop_footer_branch
      %14 = sbr.rel target = $region3
    $region8: #{tpu_custom_call.1} parent=1 // loop_exit
      _
    %373 = vsyncpa [#allocation3], 1
    %s374 = scalar_lea.sflag [#allocation3], 1
    %375 = vsyncpa %s374, 1
    %376 = vsyncpa [#allocation6], 1
    %s377 = scalar_lea.sflag [#allocation6], 1
    %378 = vsyncpa %s377, 1
    %379 = vsyncpa [#allocation4], 1
    %s380 = scalar_lea.sflag [#allocation4], 1
    %381 = vsyncpa %s380, 1

</llo_original>
